<compile_context>
chip_gen: v7x
topology: tpu7x:2x2x1
jax: 0.10.0
libtpu: 0.0.40
codegen_flags: <defaults>
</compile_context>

<pallas_src>
import functools

import numpy as np
import jax
import jax.numpy as jnp
from jax.experimental import pallas as pl
from jax.experimental.pallas import tpu as pltpu

_MAX_FUSED_HW = 4096        # fused (HW, HW) operator path only for modest spatial sizes
_X_TILE_BYTES = 4 << 20     # target bytes of x per batch tile (mem-bound regime)
_CT_TILE_BYTES = 16 << 20   # max double-buffered bytes for the bf16 operator block
_NATIVE_DTYPES = (np.dtype(jnp.float32), np.dtype(jnp.bfloat16))


def _round_up(n, m):
    return ((n + m - 1) // m) * m


def _choose_tiles(n, hw, itemsize):
    """Pick (batch_tile TB, operator-column tile TN)."""
    # TB: ~4 MiB of x per step, capped; allow >= 2 batch-grid steps when the
    # batch permits (v7x megacore: 2 TensorCores share the 'parallel' axis).
    tb_target = max(128, _X_TILE_BYTES // max(hw * itemsize, 1))
    tb_target = min(tb_target, 4096)
    half = _round_up(max(1, -(-n // 2)), 8)
    tb = max(8, min(tb_target, half))
    tb = _round_up(tb, 8)
    if tb >= 128:
        tb = _round_up(tb, 128)        # keep the 128-row MXU fully fed (v5e)
    # TN: full width unless the double-buffered bf16 operator block would blow
    # the budget (keeps v7x's 64 MiB VMEM comfortable at HW=4096).
    tn = hw
    while tn > 128 and (2 * hw * tn * 2) > _CT_TILE_BYTES and tn % 2 == 0:
        tn //= 2
    return tb, tn


# --------------------------------------------------------------------------- #
# Kernel: one (batch tile, operator-column tile) per grid step.
# --------------------------------------------------------------------------- #
def _make_kernel(single_col):
    def kernel(x_ref, d_ref, ct_ref, o_ref):
        x = x_ref[...]                                        # (TB, HW) native dtype
        corr = jnp.dot(x.astype(jnp.bfloat16), ct_ref[...],   # MXU (TB,HW)@(HW,TN)
                       preferred_element_type=jnp.float32)
        if single_col:
            xj = x                                            # TN == HW
        else:
            tn = ct_ref.shape[1]
            col = pl.multiple_of(pl.program_id(1) * tn, tn)
            xj = x_ref[:, pl.ds(col, tn)]                     # (TB, TN)
        diag = xj.astype(jnp.float32) * d_ref[...]            # exact f32 pass-through
        o_ref[...] = (diag + corr).astype(o_ref.dtype)
    return kernel


@functools.partial(jax.jit, static_argnames=("tb", "tn"))
def _passfilter_apply(x_flat, d, ct, tb, tn):
    n, hw = x_flat.shape
    grid_b = pl.cdiv(n, tb)       # ragged last block handled by masked stores
    grid_c = pl.cdiv(hw, tn)
    isz = x_flat.dtype.itemsize

    # Double-buffered block footprints: x, d, C^T, out (+ slack for internals).
    need = 2 * (tb * hw * isz + 8 * tn * 4 + hw * tn * 2 + tb * tn * isz)
    vmem_limit = int(min(max(need + (8 << 20), 32 << 20), 64 << 20))

    cost = pl.CostEstimate(
        flops=2 * grid_b * tb * hw * hw,
        transcendentals=0,
        bytes_accessed=int(2 * grid_b * tb * hw * isz          # x read + out write
                           + grid_b * grid_c * hw * tn * 2     # C^T (re)reads
                           + hw * 4),                          # diagonal
    )

    return pl.pallas_call(
        _make_kernel(grid_c == 1),
        grid=(grid_b, grid_c),
        in_specs=[
            pl.BlockSpec((tb, hw), lambda i, j: (i, 0)),    # x: resident across j
            pl.BlockSpec((1, tn), lambda i, j: (0, j)),     # diag(A) (f32)
            pl.BlockSpec((hw, tn), lambda i, j: (0, j)),    # C^T column tile (bf16)
        ],
        out_specs=pl.BlockSpec((tb, tn), lambda i, j: (i, j)),  # lane-dense output
        out_shape=jax.ShapeDtypeStruct((n, hw), x_flat.dtype),
        compiler_params=pltpu.CompilerParams(
            dimension_semantics=("parallel", "arbitrary"),
            vmem_limit_bytes=vmem_limit,
        ),
        cost_estimate=cost,
    )(x_flat, d, ct)


# --------------------------------------------------------------------------- #
# Host-side (glue) construction of the fused operator.
# --------------------------------------------------------------------------- #
def _build_operator(H, W, mode, ratio):
    """Fold fft2 / fftshift / mask / (ifftshift) / ifft2 / Re into one real
    (HW, HW) operator A; return (diag(A) as f32 (1,HW), (A - diag)^T as bf16)."""
    kH, kW = np.arange(H), np.arange(W)
    DH = np.exp(-2j * np.pi * np.outer(kH, kH) / H) / np.sqrt(H)   # ortho fwd DFT (rows)
    DW = np.exp(-2j * np.pi * np.outer(kW, kW) / W) / np.sqrt(W)   # ortho fwd DFT (cols)
    GH, GW = np.conj(DH), np.conj(DW)                              # ortho inverse DFT

    # Mask built in the *shifted* frequency plane, exactly as the torch reference.
    Ms = np.ones((H, W), dtype=np.float64)
    if mode == 'high':
        oy, ox = int(H / 2), int(W / 2)
        cutoff = min(int(ratio * W / 2), W)
        Ms[oy - cutoff:oy + cutoff, ox - cutoff:ox + cutoff] = 0.0
        M = np.fft.ifftshift(Ms, axes=(-2, -1))    # reference undoes the shift
        FH, FW = DH, DW
    elif mode == 'low':
        cutoff = max(int((1.0 - ratio) * W), 0)
        Ms[cutoff:, cutoff:] = 0.0
        M = Ms
        FH = np.fft.fftshift(DH, axes=0)           # reference keeps the shift
        FW = np.fft.fftshift(DW, axes=0)
    elif mode == 'band':
        cutoff = min(int(ratio * W) // 2, W // 2)
        c = W // 2
        Ms[c - cutoff:c + cutoff, c - cutoff:c + cutoff] = 0.0
        M = Ms
        FH = np.fft.fftshift(DH, axes=0)
        FW = np.fft.fftshift(DW, axes=0)
    else:
        raise ValueError(f"unknown mode {mode!r}")

    # Row-major vec identity: vec(F_H X F_W^T) = (F_H (x) F_W) vec(X).
    Fk = np.kron(FH, FW)                 # (HW, HW) forward 2-D DFT (+ optional shift)
    Gk = np.kron(GH, GW)                 # (HW, HW) inverse 2-D DFT
    m = M.reshape(-1)
    A = np.real(Gk @ (m[:, None] * Fk))  # fused real operator

    d = np.diag(A).copy()                # dominant pass-through, kept exact in f32
    C = A - np.diag(d)                   # small off-diagonal correction -> bf16
    d_dev = jnp.asarray(d.reshape(1, H * W), dtype=jnp.float32)
    ct_dev = jnp.asarray(C.T, dtype=jnp.bfloat16)
    return d_dev, ct_dev


# --------------------------------------------------------------------------- #
# Public module-like wrapper (matches the PyTorch PassFilter semantics).
# --------------------------------------------------------------------------- #
class PassFilterPallas:
    """JAX/Pallas equivalent of the PyTorch PassFilter module (no learnable params)."""

    _op_cache = {}   # (H, W, mode, ratio) -> (d, C^T) device arrays

    def __init__(self, mode: str = 'high', ratio: float = 1.0):
        self.mode, self.ratio = mode, ratio

    def __call__(self, x):
        x = jnp.asarray(x)
        old_dtype = x.dtype
        B, C, H, W = x.shape
        hw = H * W
        if hw > _MAX_FUSED_HW:
            # TODO(synk): separable batched-DFT path for large spatial sizes
            # (the fused (HW, HW) operator would be too expensive to build there).
            raise NotImplementedError("PassFilterPallas fused path supports H*W <= 4096")

        key = (H, W, self.mode, float(self.ratio))
        ops = PassFilterPallas._op_cache.get(key)
        if ops is None:
            ops = _build_operator(H, W, self.mode, self.ratio)
            PassFilterPallas._op_cache[key] = ops
        d, ct = ops

        # dtype-preserving path for f32 / bf16; anything else goes via f32 like
        # the torch reference (x.to(float32) ... .to(old_dtype)).
        compute_dtype = old_dtype if old_dtype in _NATIVE_DTYPES else np.dtype(np.float32)

        n = B * C
        xf = x.reshape(n, hw)
        if xf.dtype != compute_dtype:
            xf = xf.astype(compute_dtype)

        tb, tn = _choose_tiles(n, hw, np.dtype(compute_dtype).itemsize)
        out = _passfilter_apply(xf, d, ct, tb, tn).reshape(B, C, H, W)
        if out.dtype != old_dtype:
            out = out.astype(old_dtype)
        return out


# --------------------------------------------------------------------------- #
# Verification reference (direct numpy transcription of the torch forward).
# --------------------------------------------------------------------------- #
def _reference_numpy(x, mode, ratio):
    x = x.astype(np.float32)
    xfft = np.fft.fft2(x, norm='ortho')
    xfft = np.fft.fftshift(xfft, axes=(-2, -1))
    H, W = xfft.shape[-2], xfft.shape[-1]
    if mode == 'high':
        oy, ox = int(H / 2), int(W / 2)
        cutoff = min(int(ratio * W / 2), W)
        xfft[..., oy - cutoff:oy + cutoff, ox - cutoff:ox + cutoff] = 0
        xfft = np.fft.ifftshift(xfft, axes=(-2, -1))
    elif mode == 'low':
        cutoff = max(int((1.0 - ratio) * W), 0)
        xfft[..., cutoff:, cutoff:] = 0
    elif mode == 'band':
        cutoff = min(int(ratio * W) // 2, W // 2)
        c = W // 2
        xfft[..., c - cutoff:c + cutoff, c - cutoff:c + cutoff] = 0
    out = np.fft.ifft2(xfft, norm='ortho').real
    return out.astype(np.float32)


if __name__ == "__main__":
    key = jax.random.PRNGKey(0)
    x = jax.random.normal(key, (2, 4, 16, 16), dtype=jnp.float32)
    x_np = np.asarray(x)

    # f32 path, all three modes (HW=256, single column tile, single batch step)
    for mode, ratio in [('high', 0.25), ('low', 0.5), ('band', 0.5)]:
        mod = PassFilterPallas(mode=mode, ratio=ratio)
        out = jax.block_until_ready(mod(x))
        ref = _reference_numpy(x_np, mode, ratio)
        assert out.dtype == x.dtype
        np.testing.assert_allclose(np.asarray(out), ref, rtol=1e-2, atol=1e-2)

    # bf16 dtype-preserving path (kernel streams bf16 in and writes bf16 out)
    x_bf = x.astype(jnp.bfloat16)
    out_bf = jax.block_until_ready(PassFilterPallas('high', 0.25)(x_bf))
    assert out_bf.dtype == jnp.bfloat16
    ref_bf = _reference_numpy(np.asarray(x_bf, np.float32), 'high', 0.25)
    np.testing.assert_allclose(np.asarray(out_bf, np.float32), ref_bf,
                               rtol=6e-2, atol=6e-2)

    # ragged batch grid (n=15 -> 2 batch steps, masked tail) at 32x32
    x2 = jax.random.normal(jax.random.PRNGKey(1), (3, 5, 32, 32), dtype=jnp.float32)
    out2 = jax.block_until_ready(PassFilterPallas('high', 0.25)(x2))
    ref2 = _reference_numpy(np.asarray(x2), 'high', 0.25)
    np.testing.assert_allclose(np.asarray(out2), ref2, rtol=3e-2, atol=3e-2)

    print("KERNEL_OK")
</pallas_src>

<mosaic_0001>
module attributes {stable_mosaic.version = 11 : i64} {
  func.func @kernel(%arg0: i32, %arg1: i32, %arg2: memref<8x256xf32, #tpu.memory_space<vmem>>, %arg3: memref<1x256xf32, #tpu.memory_space<vmem>>, %arg4: memref<256x256xbf16, #tpu.memory_space<vmem>>, %arg5: memref<8x256xf32, #tpu.memory_space<vmem>>) attributes {dimension_semantics = [#tpu.dimension_semantics<parallel>, #tpu.dimension_semantics<arbitrary>], iteration_bounds = array<i64: 1, 1>, scalar_prefetch = 0 : i64, scratch_operands = 0 : i64, tpu.core_type = #tpu.core_type<tc>, window_params = [{transform_indices = @transform_0, window_bounds = array<i64: 8, 256>}, {transform_indices = @transform_1, window_bounds = array<i64: 1, 256>}, {transform_indices = @transform_2, window_bounds = array<i64: 256, 256>}, {transform_indices = @transform_3, window_bounds = array<i64: 8, 256>}]} {
    %c0 = arith.constant 0 : index
    %c0_0 = arith.constant 0 : index
    %0 = vector.load %arg2[%c0, %c0_0] : memref<8x256xf32, #tpu.memory_space<vmem>>, vector<8x256xf32>
    %1 = arith.truncf %0 : vector<8x256xf32> to vector<8x256xbf16>
    %c0_1 = arith.constant 0 : index
    %c0_2 = arith.constant 0 : index
    %2 = vector.load %arg4[%c0_1, %c0_2] : memref<256x256xbf16, #tpu.memory_space<vmem>>, vector<256x256xbf16>
    %cst = arith.constant dense<0.000000e+00> : vector<8x256xf32>
    %3 = tpu.matmul %1, %2, %cst {dimension_numbers = #tpu.dot_dimension_numbers<[1], [0], [0], [1], [0, 0, 1, 1], [], []>} : vector<8x256xbf16>, vector<256x256xbf16>, vector<8x256xf32> -> vector<8x256xf32>
    %c0_3 = arith.constant 0 : index
    %c0_4 = arith.constant 0 : index
    %4 = vector.load %arg3[%c0_3, %c0_4] : memref<1x256xf32, #tpu.memory_space<vmem>>, vector<1x256xf32>
    %5 = vector.broadcast %4 : vector<1x256xf32> to vector<8x256xf32>
    %6 = arith.mulf %0, %5 : vector<8x256xf32>
    %7 = arith.addf %6, %3 : vector<8x256xf32>
    %c0_5 = arith.constant 0 : index
    %c0_6 = arith.constant 0 : index
    %8 = vector.load %arg5[%c0_5, %c0_6] : memref<8x256xf32, #tpu.memory_space<vmem>>, vector<8x256xf32>
    tpu.vector_store %arg5[%c0_5, %c0_6], %7 {strides = array<i32>} : memref<8x256xf32, #tpu.memory_space<vmem>>, vector<8x256xf32>,
    return
  }
  func.func @transform_0(%arg0: i32, %arg1: i32) -> (i32, i32) {
    %c0_i32 = arith.constant 0 : i32
    %c0_i32_0 = arith.constant 0 : i32
    return %arg0, %c0_i32 : i32, i32
  }
  func.func @transform_1(%arg0: i32, %arg1: i32) -> (i32, i32) {
    %c0_i32 = arith.constant 0 : i32
    %c0_i32_0 = arith.constant 0 : i32
    return %c0_i32, %arg1 : i32, i32
  }
  func.func @transform_2(%arg0: i32, %arg1: i32) -> (i32, i32) {
    %c0_i32 = arith.constant 0 : i32
    %c0_i32_0 = arith.constant 0 : i32
    return %c0_i32, %arg1 : i32, i32
  }
  func.func @transform_3(%arg0: i32, %arg1: i32) -> (i32, i32) {
    %c0_i32 = arith.constant 0 : i32
    return %arg0, %arg1 : i32, i32
  }
}

</mosaic_0001>

<llo_original>
// kernel: _passfilter_apply.1
$region0: #{_passfilter_apply.1}
  #allocation0 [shape = 'u32[]', space=smem, size = 0x4, offset = 0x4, fixed_abs, tag = 'smem constant byte address 0x4 - core index']
  #allocation1 [shape = 'u32[144,128]{1,0:T(1,128)}', space=vmem, size = 0x12000, scoped, tag = 'internal scratch']
  %s0 = inlined_call_operand.hbm [shape: f32[8,256], index: 0, kind: input, shape index: {}]
  %s1 = inlined_call_operand.vmem [shape: f32[1,256], index: 1, kind: input, shape index: {}]
  %s2 = inlined_call_operand.hbm [shape: bf16[256,256], index: 2, kind: input, shape index: {}]
  %s3 = inlined_call_operand.hbm [shape: f32[8,256], index: 3, kind: output, shape index: {}]
  %s4 = sld [smem:[#allocation0]]
  $region30: #{_passfilter_apply.1} parent=0
    _
  %s6 = ssub.s32 1, %s4
  %s7 = scalar_select 0, %s6, %s4
  $region1: #{_passfilter_apply.1} parent=0
    #allocation2 [shape = 'u8[8192]{0}', space=vmem, size = 0x2000, scoped, tag = 'input window, operand 0, single buffered']
    #allocation3 [shape = 's32[1]{0}', space=sflag, size = 0x4, scoped, tag = 'scoped memory for _passfilter_apply.1']
    #allocation4 [shape = 's32[1]{0}', space=sflag, size = 0x4, scoped, tag = 'scoped memory for _passfilter_apply.1']
    #allocation5 [shape = 'u8[131072]{0}', space=vmem, size = 0x20000, scoped, tag = 'input window, operand 2, single buffered']
    #allocation6 [shape = 's32[1]{0}', space=sflag, size = 0x4, scoped, tag = 'scoped memory for _passfilter_apply.1']
    #allocation7 [shape = 'u8[8192]{0}', space=vmem, size = 0x2000, scoped, tag = 'output window, operand 0, single buffered']
    %8 = vsyncpa [#allocation3], 0
    %9 = vsyncpa [#allocation6], 0
    %10 = vsyncpa [#allocation4], 0
    // Predicated region
    $region2: #{_passfilter_apply.1} parent=1 // pred_check
      _
    $region3: #{_passfilter_apply.1} parent=1 // pred_check_branch
      %12 = sbr.rel (0) target = $region5
    $region4: #{_passfilter_apply.1} parent=1 // pred_region
      %s14 = ssub.s32 256, 256
      %15 = vsyncadd [#allocation3], %s14
      %s17 = sshll.u32 [#allocation2], 4
      %s18 = int_to_ptr.vmem [resolvable:$true] %s17
      %20 = dma.hbm_to_vmem [thread:$0]  %s0, 256, %s18, [#allocation3]
    $region5: #{_passfilter_apply.1} parent=1 // pred_fallthru
      _
    // Predicated region
    $region6: #{_passfilter_apply.1} parent=1 // pred_check
      _
    $region7: #{_passfilter_apply.1} parent=1 // pred_check_branch
      %22 = sbr.rel (0) target = $region9
    $region8: #{_passfilter_apply.1} parent=1 // pred_region
      _
    $region9: #{_passfilter_apply.1} parent=1 // pred_fallthru
      _
    // Predicated region
    $region10: #{_passfilter_apply.1} parent=1 // pred_check
      _
    $region11: #{_passfilter_apply.1} parent=1 // pred_check_branch
      %24 = sbr.rel (0) target = $region13
    $region12: #{_passfilter_apply.1} parent=1 // pred_region
      %s26 = ssub.s32 4096, 4096
      %27 = vsyncadd [#allocation6], %s26
      %s28 = sshll.u32 [#allocation5], 4
      %s29 = int_to_ptr.vmem [resolvable:$true] %s28
      %34 = dma.hbm_to_vmem [thread:$0]  %s2, 4096, %s29, [#allocation6], 128, 128, 8
    $region13: #{_passfilter_apply.1} parent=1 // pred_fallthru
      _
    // Predicated region
    $region14: #{_passfilter_apply.1} parent=1 // pred_check
      _
    $region15: #{_passfilter_apply.1} parent=1 // pred_check_branch
      %36 = sbr.rel (0) target = $region17
    $region16: #{_passfilter_apply.1} parent=1 // pred_region
      %37 = dma.done [#allocation3], 256
    $region17: #{_passfilter_apply.1} parent=1 // pred_fallthru
      _
    // Predicated region
    $region18: #{_passfilter_apply.1} parent=1 // pred_check
      _
    $region19: #{_passfilter_apply.1} parent=1 // pred_check_branch
      %39 = sbr.rel (0) target = $region21
    $region20: #{_passfilter_apply.1} parent=1 // pred_region
      %40 = dma.done [#allocation6], 4096
    $region21: #{_passfilter_apply.1} parent=1 // pred_fallthru
      _
    %v41 = vld [vmem:[#allocation2] sm:$0xff]
    %v42 = vld [vmem:[#allocation2 + $0x8] sm:$0xff]
    %v43 = vpack.c.bf16 %v41, %v41
    %v44 = vpack.c.bf16 %v42, %v42
    %v45 = vld [vmem:[#allocation5] sm:$0xff]
    %v46 = vld [vmem:[#allocation5 + $0x8] sm:$0xff]
    %v47 = vld [vmem:[#allocation5 + $0x10] sm:$0xff]
    %v48 = vld [vmem:[#allocation5 + $0x18] sm:$0xff]
    %v49 = vld [vmem:[#allocation5 + $0x20] sm:$0xff]
    %v50 = vld [vmem:[#allocation5 + $0x28] sm:$0xff]
    %v51 = vld [vmem:[#allocation5 + $0x30] sm:$0xff]
    %v52 = vld [vmem:[#allocation5 + $0x38] sm:$0xff]
    %v53 = vld [vmem:[#allocation5 + $0x40] sm:$0xff]
    %v54 = vld [vmem:[#allocation5 + $0x48] sm:$0xff]
    %v55 = vld [vmem:[#allocation5 + $0x50] sm:$0xff]
    %v56 = vld [vmem:[#allocation5 + $0x58] sm:$0xff]
    %v57 = vld [vmem:[#allocation5 + $0x60] sm:$0xff]
    %v58 = vld [vmem:[#allocation5 + $0x68] sm:$0xff]
    %v59 = vld [vmem:[#allocation5 + $0x70] sm:$0xff]
    %v60 = vld [vmem:[#allocation5 + $0x78] sm:$0xff]
    %v61 = vld [vmem:[#allocation5 + $0x80] sm:$0xff]
    %v62 = vld [vmem:[#allocation5 + $0x88] sm:$0xff]
    %v63 = vld [vmem:[#allocation5 + $0x90] sm:$0xff]
    %v64 = vld [vmem:[#allocation5 + $0x98] sm:$0xff]
    %v65 = vld [vmem:[#allocation5 + $0xa0] sm:$0xff]
    %v66 = vld [vmem:[#allocation5 + $0xa8] sm:$0xff]
    %v67 = vld [vmem:[#allocation5 + $0xb0] sm:$0xff]
    %v68 = vld [vmem:[#allocation5 + $0xb8] sm:$0xff]
    %v69 = vld [vmem:[#allocation5 + $0xc0] sm:$0xff]
    %v70 = vld [vmem:[#allocation5 + $0xc8] sm:$0xff]
    %v71 = vld [vmem:[#allocation5 + $0xd0] sm:$0xff]
    %v72 = vld [vmem:[#allocation5 + $0xd8] sm:$0xff]
    %v73 = vld [vmem:[#allocation5 + $0xe0] sm:$0xff]
    %v74 = vld [vmem:[#allocation5 + $0xe8] sm:$0xff]
    %v75 = vld [vmem:[#allocation5 + $0xf0] sm:$0xff]
    %v76 = vld [vmem:[#allocation5 + $0xf8] sm:$0xff]
    %v109 = vunpack.c.l.b16 %v45
    %v110 = vunpack.c.h.b16 %v45
    %v111 = vunpack.c.l.b16 %v46
    %v112 = vunpack.c.h.b16 %v46
    %v113 = vunpack.c.l.b16 %v47
    %v114 = vunpack.c.h.b16 %v47
    %v115 = vunpack.c.l.b16 %v48
    %v116 = vunpack.c.h.b16 %v48
    %v117 = vunpack.c.l.b16 %v49
    %v118 = vunpack.c.h.b16 %v49
    %v119 = vunpack.c.l.b16 %v50
    %v120 = vunpack.c.h.b16 %v50
    %v121 = vunpack.c.l.b16 %v51
    %v122 = vunpack.c.h.b16 %v51
    %v123 = vunpack.c.l.b16 %v52
    %v124 = vunpack.c.h.b16 %v52
    %v125 = vunpack.c.l.b16 %v53
    %v126 = vunpack.c.h.b16 %v53
    %v127 = vunpack.c.l.b16 %v54
    %v128 = vunpack.c.h.b16 %v54
    %v129 = vunpack.c.l.b16 %v55
    %v130 = vunpack.c.h.b16 %v55
    %v131 = vunpack.c.l.b16 %v56
    %v132 = vunpack.c.h.b16 %v56
    %v133 = vunpack.c.l.b16 %v57
    %v134 = vunpack.c.h.b16 %v57
    %v135 = vunpack.c.l.b16 %v58
    %v136 = vunpack.c.h.b16 %v58
    %v137 = vunpack.c.l.b16 %v59
    %v138 = vunpack.c.h.b16 %v59
    %v139 = vunpack.c.l.b16 %v60
    %v140 = vunpack.c.h.b16 %v60
    %v141 = vunpack.c.l.b16 %v61
    %v142 = vunpack.c.h.b16 %v61
    %v143 = vunpack.c.l.b16 %v62
    %v144 = vunpack.c.h.b16 %v62
    %v145 = vunpack.c.l.b16 %v63
    %v146 = vunpack.c.h.b16 %v63
    %v147 = vunpack.c.l.b16 %v64
    %v148 = vunpack.c.h.b16 %v64
    %v149 = vunpack.c.l.b16 %v65
    %v150 = vunpack.c.h.b16 %v65
    %v151 = vunpack.c.l.b16 %v66
    %v152 = vunpack.c.h.b16 %v66
    %v153 = vunpack.c.l.b16 %v67
    %v154 = vunpack.c.h.b16 %v67
    %v155 = vunpack.c.l.b16 %v68
    %v156 = vunpack.c.h.b16 %v68
    %v157 = vunpack.c.l.b16 %v69
    %v158 = vunpack.c.h.b16 %v69
    %v159 = vunpack.c.l.b16 %v70
    %v160 = vunpack.c.h.b16 %v70
    %v161 = vunpack.c.l.b16 %v71
    %v162 = vunpack.c.h.b16 %v71
    %v163 = vunpack.c.l.b16 %v72
    %v164 = vunpack.c.h.b16 %v72
    %v165 = vunpack.c.l.b16 %v73
    %v166 = vunpack.c.h.b16 %v73
    %v167 = vunpack.c.l.b16 %v74
    %v168 = vunpack.c.h.b16 %v74
    %v169 = vunpack.c.l.b16 %v75
    %v170 = vunpack.c.h.b16 %v75
    %v171 = vunpack.c.l.b16 %v76
    %v172 = vunpack.c.h.b16 %v76
    %v173 = vpack.c.b16 %v111, %v109
    %v174 = vpack.c.b16 %v112, %v110
    %v175 = vpack.c.b16 %v115, %v113
    %v176 = vpack.c.b16 %v116, %v114
    %v177 = vpack.c.b16 %v119, %v117
    %v178 = vpack.c.b16 %v120, %v118
    %v179 = vpack.c.b16 %v123, %v121
    %v180 = vpack.c.b16 %v124, %v122
    %v181 = vpack.c.b16 %v127, %v125
    %v182 = vpack.c.b16 %v128, %v126
    %v183 = vpack.c.b16 %v131, %v129
    %v184 = vpack.c.b16 %v132, %v130
    %v185 = vpack.c.b16 %v135, %v133
    %v186 = vpack.c.b16 %v136, %v134
    %v187 = vpack.c.b16 %v139, %v137
    %v188 = vpack.c.b16 %v140, %v138
    %v189 = vpack.c.b16 %v143, %v141
    %v190 = vpack.c.b16 %v144, %v142
    %v191 = vpack.c.b16 %v147, %v145
    %v192 = vpack.c.b16 %v148, %v146
    %v193 = vpack.c.b16 %v151, %v149
    %v194 = vpack.c.b16 %v152, %v150
    %v195 = vpack.c.b16 %v155, %v153
    %v196 = vpack.c.b16 %v156, %v154
    %v197 = vpack.c.b16 %v159, %v157
    %v198 = vpack.c.b16 %v160, %v158
    %v199 = vpack.c.b16 %v163, %v161
    %v200 = vpack.c.b16 %v164, %v162
    %v201 = vpack.c.b16 %v167, %v165
    %v202 = vpack.c.b16 %v168, %v166
    %v203 = vpack.c.b16 %v171, %v169
    %v204 = vpack.c.b16 %v172, %v170
    %237 = vmatprep.subr.bf16.mxu0 %v174
    %238 = vmatpush1.bf16.msra.mxu0 %v173
    %239 = vmatprep.subr.bf16.mxu0 %v176
    %240 = vmatpush1.bf16.msra.mxu0 %v175
    %241 = vmatprep.subr.bf16.mxu0 %v178
    %242 = vmatpush1.bf16.msra.mxu0 %v177
    %243 = vmatprep.subr.bf16.mxu0 %v180
    %244 = vmatpush1.bf16.msra.mxu0 %v179
    %245 = vmatprep.subr.bf16.mxu0 %v182
    %246 = vmatpush1.bf16.msra.mxu0 %v181
    %247 = vmatprep.subr.bf16.mxu0 %v184
    %248 = vmatpush1.bf16.msra.mxu0 %v183
    %249 = vmatprep.subr.bf16.mxu0 %v186
    %250 = vmatpush1.bf16.msra.mxu0 %v185
    %251 = vmatprep.subr.bf16.mxu0 %v188
    %252 = vmatpush1.bf16.msra.mxu0 %v187
    %253 = vmatprep.subr.bf16.mxu0 %v190
    %254 = vmatpush1.bf16.msra.mxu0 %v189
    %255 = vmatprep.subr.bf16.mxu0 %v192
    %256 = vmatpush1.bf16.msra.mxu0 %v191
    %257 = vmatprep.subr.bf16.mxu0 %v194
    %258 = vmatpush1.bf16.msra.mxu0 %v193
    %259 = vmatprep.subr.bf16.mxu0 %v196
    %260 = vmatpush1.bf16.msra.mxu0 %v195
    %261 = vmatprep.subr.bf16.mxu0 %v198
    %262 = vmatpush1.bf16.msra.mxu0 %v197
    %263 = vmatprep.subr.bf16.mxu0 %v200
    %264 = vmatpush1.bf16.msra.mxu0 %v199
    %265 = vmatprep.subr.bf16.mxu0 %v202
    %266 = vmatpush1.bf16.msra.mxu0 %v201
    %267 = vmatprep.subr.bf16.mxu0 %v204
    %268 = vmatpush1.bf16.msra.mxu0 %v203
    %269 = vmatprep.mubr.bf16.mxu0 %v44
    %270 = vmatmul.mubr.bf16.gmra.mrb[0].mxu0 %v43
    %v271 = vpop.f32.mrb[0].mxu0
    %v272 = vadd.f32 0.0, %v271
    %v273 = vpop.f32.mrb[0].mxu0
    %v274 = vadd.f32 0.0, %v273
    %v275 = vpop.f32.mrb[0].mxu0
    %v276 = vpop.f32.mrb[0].mxu0
    %277 = vdwg.mxu0
    %v278 = vld [vmem:[%s1] sm:$0x3]
    %v280 = vlaneseq
    %v281 = vshrl.u32 %v280, 7
    %v282 = vsub.s32 0, %v281
    %v283 = vrot.slane %v278, %v282
    %v284 = vlaneseq
    %v285 = vshrl.u32 %v284, 7
    %v286 = vsub.s32 1, %v285
    %v287 = vrot.slane %v278, %v286
    %v290 = vmul.f32 %v41, %v283
    %v291 = vmul.f32 %v42, %v287
    %v292 = vadd.f32 %v290, %v272
    %v293 = vadd.f32 %v291, %v274
    %294 = vst [vmem:[#allocation7] sm:$0xff] %v292
    %295 = vst [vmem:[#allocation7 + $0x8] sm:$0xff] %v293
    // Predicated region
    $region22: #{_passfilter_apply.1} parent=1 // pred_check
      _
    $region23: #{_passfilter_apply.1} parent=1 // pred_check_branch
      %297 = sbr.rel (0) target = $region25
    $region24: #{_passfilter_apply.1} parent=1 // pred_region
      %s299 = ssub.s32 256, 256
      %300 = vsyncadd [#allocation4], %s299
      %s302 = sshll.u32 [#allocation7], 4
      %s303 = int_to_ptr.vmem [resolvable:$true] %s302
      %305 = dma.vmem_to_hbm [thread:$0]  %s303, 256, %s3, [#allocation4]
    $region25: #{_passfilter_apply.1} parent=1 // pred_fallthru
      _
    // Predicated region
    $region26: #{_passfilter_apply.1} parent=1 // pred_check
      _
    $region27: #{_passfilter_apply.1} parent=1 // pred_check_branch
      %307 = sbr.rel (0) target = $region29
    $region28: #{_passfilter_apply.1} parent=1 // pred_region
      %308 = dma.done [#allocation4], 256
    $region29: #{_passfilter_apply.1} parent=1 // pred_fallthru
      _
    %309 = vsyncpa [#allocation3], 1
    %310 = vsyncpa [#allocation6], 1
    %311 = vsyncpa [#allocation4], 1

</llo_original>
